<compile_context>
chip_gen: v7x
topology: tpu7x:2x2x1
jax: 0.10.0
libtpu: 0.0.40
codegen_flags: <defaults>
</compile_context>

<pallas_src>
import jax
import jax.numpy as jnp
from jax import lax
from jax.experimental import pallas as pl
from jax.experimental.pallas import tpu as pltpu


def _round_up(x: int, m: int) -> int:
    return (x + m - 1) // m * m


def _fused_model_kernel(xc_ref, xd_ref,
                        wse_ref, bse_ref,
                        wde_ref, bde_ref,
                        wcfc_ref, wcfd_ref,
                        bcf_ref,
                        o_ref):
    """One batch tile: bf16-MXU encoders + fused-concat classifier + sigmoid.

    Output is written lane-dense as a (1, tb) row (batch on the lane axis)."""
    cdt = wse_ref.dtype                                   # bf16 compute dtype for MXU

    # sampleEncoder: Linear + ReLU  (bf16 MXU matmul, f32 accumulate, f32 epilogue)
    hc = jnp.dot(xc_ref[...].astype(cdt), wse_ref[...],
                 preferred_element_type=jnp.float32)
    hc = jnp.maximum(hc + bse_ref[...], 0.0)

    # drugEncoder: Linear + ReLU
    hd = jnp.dot(xd_ref[...].astype(cdt), wde_ref[...],
                 preferred_element_type=jnp.float32)
    hd = jnp.maximum(hd + bde_ref[...], 0.0)

    # classifier on the (virtual) concat, fused algebraically:
    #   concat(hc, hd) @ Wcf == hc @ Wcf[:H] + hd @ Wcf[H:]
    # Computed as (1,H) contracted against (tb,H) on its last dim (rhs-transposed
    # matmul, like q @ k^T) so the logits come out lane-dense (1, tb).
    dn = (((1,), (1,)), ((), ()))
    logits = (lax.dot_general(wcfc_ref[...], hc, dn,
                              preferred_element_type=jnp.float32)
              + lax.dot_general(wcfd_ref[...], hd, dn,
                                preferred_element_type=jnp.float32)
              + bcf_ref[0, 0])                            # scalar bias from SMEM
    o_ref[...] = jax.nn.sigmoid(logits).astype(o_ref.dtype)


def prepare_params(params, compute_dtype=jnp.bfloat16):
    """One-time packing (hoisted out of the per-call path): bf16 encoder weights
    for the MXU, classifier column split + transpose, f32 bias rows, scalar bias."""
    H = params["w_se"].shape[1]
    w_cf = params["w_cf"]
    return dict(
        w_se=params["w_se"].astype(compute_dtype),              # (Dc, H) bf16
        w_de=params["w_de"].astype(compute_dtype),              # (Dd, H) bf16
        b_se=params["b_se"].reshape(1, H).astype(jnp.float32),  # (1, H)  f32
        b_de=params["b_de"].reshape(1, H).astype(jnp.float32),  # (1, H)  f32
        w_cf_c=w_cf[:H, :].T.astype(jnp.float32),               # (1, H)  f32
        w_cf_d=w_cf[H:, :].T.astype(jnp.float32),               # (1, H)  f32
        b_cf=params["b_cf"].reshape(1, 1).astype(jnp.float32),  # (1, 1)  f32 (SMEM)
    )


def _choose_batch_tiling(B: int, block_b: int):
    """128-aligned batch tile + padded batch; never a single unbounded tile."""
    block_b = max(128, _round_up(block_b, 128))   # keep tb a multiple of 128
    block_b = min(block_b, 4096)                  # VMEM cap (v7x: 64 MiB phys / 32 scoped)
    tb = min(block_b, _round_up(B, 128))
    if B > 128:                                   # prefer >=2 grid steps: pipelining +
        tb = min(tb, _round_up(-(-B // 2), 128))  # both v7x TensorCores stay busy
    b_pad = _round_up(B, tb)
    return tb, b_pad


def model_forward(xc, xd, prepared, *, block_b=2048):
    """Batch-tiled fused forward. Returns (B, 1) float32 probabilities.

    xc/xd may be f32 or bf16; bf16 activations halve HBM traffic (the kernel
    computes in bf16 on the MXU either way)."""
    B, Dc = xc.shape
    Dd = xd.shape[1]
    H = prepared["w_se"].shape[1]

    tb, b_pad = _choose_batch_tiling(B, block_b)
    grid = (b_pad // tb,)

    if b_pad != B:
        xc = jnp.pad(xc, ((0, b_pad - B), (0, 0)))
        xd = jnp.pad(xd, ((0, b_pad - B), (0, 0)))

    out_row = pl.pallas_call(
        _fused_model_kernel,
        out_shape=jax.ShapeDtypeStruct((1, b_pad), jnp.float32),
        grid=grid,
        in_specs=[
            pl.BlockSpec((tb, Dc), lambda i: (i, 0)),            # xc (batch-tiled)
            pl.BlockSpec((tb, Dd), lambda i: (i, 0)),            # xd (batch-tiled)
            pl.BlockSpec((Dc, H), lambda i: (0, 0)),             # w_se  (VMEM-resident)
            pl.BlockSpec((1, H), lambda i: (0, 0)),              # b_se
            pl.BlockSpec((Dd, H), lambda i: (0, 0)),             # w_de  (VMEM-resident)
            pl.BlockSpec((1, H), lambda i: (0, 0)),              # b_de
            pl.BlockSpec((1, H), lambda i: (0, 0)),              # w_cf[:H].T
            pl.BlockSpec((1, H), lambda i: (0, 0)),              # w_cf[H:].T
            pl.BlockSpec(memory_space=pltpu.MemorySpace.SMEM),   # b_cf scalar
        ],
        out_specs=pl.BlockSpec((1, tb), lambda i: (0, i)),       # lane-dense row
        compiler_params=pltpu.CompilerParams(
            dimension_semantics=("parallel",),                   # megacore on v7x
            vmem_limit_bytes=32 * 1024 * 1024),
    )(xc, xd, prepared["w_se"], prepared["b_se"],
      prepared["w_de"], prepared["b_de"],
      prepared["w_cf_c"], prepared["w_cf_d"], prepared["b_cf"])

    return out_row.reshape(b_pad, 1)[:B]


def init_params(key, cell_dim, drug_dim, hidden):
    ks = jax.random.split(key, 6)

    def lin(kw, kb, fan_in, fan_out):
        bound = 1.0 / jnp.sqrt(fan_in)
        w = jax.random.uniform(kw, (fan_in, fan_out), jnp.float32, -bound, bound)
        b = jax.random.uniform(kb, (1, fan_out), jnp.float32, -bound, bound)
        return w, b

    w_se, b_se = lin(ks[0], ks[1], cell_dim, hidden)
    w_de, b_de = lin(ks[2], ks[3], drug_dim, hidden)
    w_cf, b_cf = lin(ks[4], ks[5], 2 * hidden, 1)
    return dict(w_se=w_se, b_se=b_se, w_de=w_de, b_de=b_de, w_cf=w_cf, b_cf=b_cf)


def _reference_f32(xc, xd, params):
    hc = jnp.maximum(xc @ params["w_se"] + params["b_se"], 0.0)
    hd = jnp.maximum(xd @ params["w_de"] + params["b_de"], 0.0)
    cat = jnp.concatenate((hc, hd), axis=1)
    return jax.nn.sigmoid(cat @ params["w_cf"] + params["b_cf"])


def _reference_mixed(xc, xd, params, compute_dtype=jnp.bfloat16):
    """Reference matching the kernel's precision (bf16 MXU operands, f32 accum)."""
    hc = jnp.maximum(
        jnp.dot(xc.astype(compute_dtype), params["w_se"].astype(compute_dtype),
                preferred_element_type=jnp.float32) + params["b_se"], 0.0)
    hd = jnp.maximum(
        jnp.dot(xd.astype(compute_dtype), params["w_de"].astype(compute_dtype),
                preferred_element_type=jnp.float32) + params["b_de"], 0.0)
    cat = jnp.concatenate((hc, hd), axis=1)
    return jax.nn.sigmoid(
        jnp.dot(cat, params["w_cf"], preferred_element_type=jnp.float32)
        + params["b_cf"])


if __name__ == "__main__":
    key = jax.random.PRNGKey(0)
    k_p, k_xc, k_xd = jax.random.split(key, 3)

    # Lane/MXU-aligned feature dims; B deliberately not a tile multiple so the
    # 128-aligned batch-padding + multi-tile ("parallel" grid) path is exercised:
    # B=200 -> tb=128, b_pad=256, grid=(2,).
    B, CELL_DIM, DRUG_DIM, HIDDEN = 200, 128, 128, 128
    params = init_params(k_p, CELL_DIM, DRUG_DIM, HIDDEN)
    prepared = prepare_params(params)

    xc = jax.random.normal(k_xc, (B, CELL_DIM), jnp.float32)
    xd = jax.random.normal(k_xd, (B, DRUG_DIM), jnp.float32)

    fwd = jax.jit(model_forward, static_argnames=("block_b",))
    out = jax.block_until_ready(fwd(xc, xd, prepared))        # default block_b

    assert out.shape == (B, 1)
    ref_mixed = _reference_mixed(xc, xd, params)
    assert jnp.allclose(out, ref_mixed, atol=1e-4, rtol=1e-4), \
        float(jnp.max(jnp.abs(out - ref_mixed)))
    ref_f32 = _reference_f32(xc, xd, params)
    assert jnp.allclose(out, ref_f32, atol=5e-2), \
        float(jnp.max(jnp.abs(out - ref_f32)))

    # Also exercise the bf16-activation fast path (halves HBM traffic).
    out_bf16 = jax.block_until_ready(
        fwd(xc.astype(jnp.bfloat16), xd.astype(jnp.bfloat16), prepared))
    assert out_bf16.shape == (B, 1)
    assert jnp.allclose(out_bf16, ref_f32, atol=5e-2)

    print("KERNEL_OK")
</pallas_src>

<mosaic_0001>
module attributes {stable_mosaic.version = 11 : i64} {
  func.func @_fused_model_kernel(%arg0: i32, %arg1: memref<128x128xf32, #tpu.memory_space<vmem>>, %arg2: memref<128x128xf32, #tpu.memory_space<vmem>>, %arg3: memref<128x128xbf16, #tpu.memory_space<vmem>>, %arg4: memref<1x128xf32, #tpu.memory_space<vmem>>, %arg5: memref<128x128xbf16, #tpu.memory_space<vmem>>, %arg6: memref<1x128xf32, #tpu.memory_space<vmem>>, %arg7: memref<1x128xf32, #tpu.memory_space<vmem>>, %arg8: memref<1x128xf32, #tpu.memory_space<vmem>>, %arg9: memref<1x1xf32, #tpu.memory_space<smem>>, %arg10: memref<1x128xf32, #tpu.memory_space<vmem>>) attributes {dimension_semantics = [#tpu.dimension_semantics<parallel>], iteration_bounds = array<i64: 2>, scalar_prefetch = 0 : i64, scratch_operands = 0 : i64, tpu.core_type = #tpu.core_type<tc>, window_params = [{transform_indices = @transform_0, window_bounds = array<i64: 128, 128>}, {transform_indices = @transform_1, window_bounds = array<i64: 128, 128>}, {pipeline_mode = #tpu.pipeline_mode<synchronous>, transform_indices = @transform_2, window_bounds = array<i64: 128, 128>}, {pipeline_mode = #tpu.pipeline_mode<synchronous>, transform_indices = @transform_3, window_bounds = array<i64: 1, 128>}, {pipeline_mode = #tpu.pipeline_mode<synchronous>, transform_indices = @transform_4, window_bounds = array<i64: 128, 128>}, {pipeline_mode = #tpu.pipeline_mode<synchronous>, transform_indices = @transform_5, window_bounds = array<i64: 1, 128>}, {pipeline_mode = #tpu.pipeline_mode<synchronous>, transform_indices = @transform_6, window_bounds = array<i64: 1, 128>}, {pipeline_mode = #tpu.pipeline_mode<synchronous>, transform_indices = @transform_7, window_bounds = array<i64: 1, 128>}, {transform_indices = @transform_8, window_bounds = array<i64: 1, 1>}, {transform_indices = @transform_9, window_bounds = array<i64: 1, 128>}]} {
    %c0 = arith.constant 0 : index
    %c0_0 = arith.constant 0 : index
    %0 = vector.load %arg1[%c0, %c0_0] : memref<128x128xf32, #tpu.memory_space<vmem>>, vector<128x128xf32>
    %1 = arith.truncf %0 : vector<128x128xf32> to vector<128x128xbf16>
    %c0_1 = arith.constant 0 : index
    %c0_2 = arith.constant 0 : index
    %2 = vector.load %arg3[%c0_1, %c0_2] : memref<128x128xbf16, #tpu.memory_space<vmem>>, vector<128x128xbf16>
    %cst = arith.constant dense<0.000000e+00> : vector<128x128xf32>
    %3 = tpu.matmul %1, %2, %cst {dimension_numbers = #tpu.dot_dimension_numbers<[1], [0], [0], [1], [0, 0, 1, 1], [], []>} : vector<128x128xbf16>, vector<128x128xbf16>, vector<128x128xf32> -> vector<128x128xf32>
    %c0_3 = arith.constant 0 : index
    %c0_4 = arith.constant 0 : index
    %4 = vector.load %arg4[%c0_3, %c0_4] : memref<1x128xf32, #tpu.memory_space<vmem>>, vector<1x128xf32>
    %5 = vector.broadcast %4 : vector<1x128xf32> to vector<128x128xf32>
    %6 = arith.addf %3, %5 : vector<128x128xf32>
    %cst_5 = arith.constant 0.000000e+00 : f32
    %7 = vector.broadcast %cst_5 : f32 to vector<128x128xf32>
    %8 = arith.maximumf %6, %7 : vector<128x128xf32>
    %c0_6 = arith.constant 0 : index
    %c0_7 = arith.constant 0 : index
    %9 = vector.load %arg2[%c0_6, %c0_7] : memref<128x128xf32, #tpu.memory_space<vmem>>, vector<128x128xf32>
    %10 = arith.truncf %9 : vector<128x128xf32> to vector<128x128xbf16>
    %c0_8 = arith.constant 0 : index
    %c0_9 = arith.constant 0 : index
    %11 = vector.load %arg5[%c0_8, %c0_9] : memref<128x128xbf16, #tpu.memory_space<vmem>>, vector<128x128xbf16>
    %cst_10 = arith.constant dense<0.000000e+00> : vector<128x128xf32>
    %12 = tpu.matmul %10, %11, %cst_10 {dimension_numbers = #tpu.dot_dimension_numbers<[1], [0], [0], [1], [0, 0, 1, 1], [], []>} : vector<128x128xbf16>, vector<128x128xbf16>, vector<128x128xf32> -> vector<128x128xf32>
    %c0_11 = arith.constant 0 : index
    %c0_12 = arith.constant 0 : index
    %13 = vector.load %arg6[%c0_11, %c0_12] : memref<1x128xf32, #tpu.memory_space<vmem>>, vector<1x128xf32>
    %14 = vector.broadcast %13 : vector<1x128xf32> to vector<128x128xf32>
    %15 = arith.addf %12, %14 : vector<128x128xf32>
    %cst_13 = arith.constant 0.000000e+00 : f32
    %16 = vector.broadcast %cst_13 : f32 to vector<128x128xf32>
    %17 = arith.maximumf %15, %16 : vector<128x128xf32>
    %c0_14 = arith.constant 0 : index
    %c0_15 = arith.constant 0 : index
    %18 = vector.load %arg7[%c0_14, %c0_15] : memref<1x128xf32, #tpu.memory_space<vmem>>, vector<1x128xf32>
    %cst_16 = arith.constant dense<0.000000e+00> : vector<1x128xf32>
    %19 = tpu.matmul %18, %8, %cst_16 {dimension_numbers = #tpu.dot_dimension_numbers<[1], [1], [0], [0], [0, 0, 1, 0], [], []>} : vector<1x128xf32>, vector<128x128xf32>, vector<1x128xf32> -> vector<1x128xf32>
    %c0_17 = arith.constant 0 : index
    %c0_18 = arith.constant 0 : index
    %20 = vector.load %arg8[%c0_17, %c0_18] : memref<1x128xf32, #tpu.memory_space<vmem>>, vector<1x128xf32>
    %cst_19 = arith.constant dense<0.000000e+00> : vector<1x128xf32>
    %21 = tpu.matmul %20, %17, %cst_19 {dimension_numbers = #tpu.dot_dimension_numbers<[1], [1], [0], [0], [0, 0, 1, 0], [], []>} : vector<1x128xf32>, vector<128x128xf32>, vector<1x128xf32> -> vector<1x128xf32>
    %22 = arith.addf %19, %21 : vector<1x128xf32>
    %c0_20 = arith.constant 0 : index
    %c0_21 = arith.constant 0 : index
    %23 = memref.load %arg9[%c0_20, %c0_21] : memref<1x1xf32, #tpu.memory_space<smem>>
    %24 = vector.broadcast %23 : f32 to vector<1x128xf32>
    %25 = arith.addf %22, %24 : vector<1x128xf32>
    %26 = arith.negf %25 : vector<1x128xf32>
    %27 = math.exp %26 : vector<1x128xf32>
    %cst_22 = arith.constant 1.000000e+00 : f32
    %28 = vector.broadcast %cst_22 : f32 to vector<1x128xf32>
    %29 = arith.addf %28, %27 : vector<1x128xf32>
    %30 = arith.divf %28, %29 : vector<1x128xf32>
    %c0_23 = arith.constant 0 : index
    %c0_24 = arith.constant 0 : index
    %31 = vector.load %arg10[%c0_23, %c0_24] : memref<1x128xf32, #tpu.memory_space<vmem>>, vector<1x128xf32>
    tpu.vector_store %arg10[%c0_23, %c0_24], %30 {strides = array<i32>} : memref<1x128xf32, #tpu.memory_space<vmem>>, vector<1x128xf32>,
    return
  }
  func.func @transform_0(%arg0: i32) -> (i32, i32) {
    %c0_i32 = arith.constant 0 : i32
    %c0_i32_0 = arith.constant 0 : i32
    return %arg0, %c0_i32 : i32, i32
  }
  func.func @transform_1(%arg0: i32) -> (i32, i32) {
    %c0_i32 = arith.constant 0 : i32
    %c0_i32_0 = arith.constant 0 : i32
    return %arg0, %c0_i32 : i32, i32
  }
  func.func @transform_2(%arg0: i32) -> (i32, i32) {
    %c0_i32 = arith.constant 0 : i32
    %c0_i32_0 = arith.constant 0 : i32
    %c0_i32_1 = arith.constant 0 : i32
    return %c0_i32, %c0_i32_0 : i32, i32
  }
  func.func @transform_3(%arg0: i32) -> (i32, i32) {
    %c0_i32 = arith.constant 0 : i32
    %c0_i32_0 = arith.constant 0 : i32
    %c0_i32_1 = arith.constant 0 : i32
    return %c0_i32, %c0_i32_0 : i32, i32
  }
  func.func @transform_4(%arg0: i32) -> (i32, i32) {
    %c0_i32 = arith.constant 0 : i32
    %c0_i32_0 = arith.constant 0 : i32
    %c0_i32_1 = arith.constant 0 : i32
    return %c0_i32, %c0_i32_0 : i32, i32
  }
  func.func @transform_5(%arg0: i32) -> (i32, i32) {
    %c0_i32 = arith.constant 0 : i32
    %c0_i32_0 = arith.constant 0 : i32
    %c0_i32_1 = arith.constant 0 : i32
    return %c0_i32, %c0_i32_0 : i32, i32
  }
  func.func @transform_6(%arg0: i32) -> (i32, i32) {
    %c0_i32 = arith.constant 0 : i32
    %c0_i32_0 = arith.constant 0 : i32
    %c0_i32_1 = arith.constant 0 : i32
    return %c0_i32, %c0_i32_0 : i32, i32
  }
  func.func @transform_7(%arg0: i32) -> (i32, i32) {
    %c0_i32 = arith.constant 0 : i32
    %c0_i32_0 = arith.constant 0 : i32
    %c0_i32_1 = arith.constant 0 : i32
    return %c0_i32, %c0_i32_0 : i32, i32
  }
  func.func @transform_8(%arg0: i32) -> (i32, i32) {
    %c0_i32 = arith.constant 0 : i32
    %c0_i32_0 = arith.constant 0 : i32
    %c0_i32_1 = arith.constant 0 : i32
    return %c0_i32, %c0_i32_0 : i32, i32
  }
  func.func @transform_9(%arg0: i32) -> (i32, i32) {
    %c0_i32 = arith.constant 0 : i32
    %c0_i32_0 = arith.constant 0 : i32
    return %c0_i32, %arg0 : i32, i32
  }
}

</mosaic_0001>

<llo_original>
// kernel: model_forward.1
$region0: #{model_forward.1}
  #allocation0 [shape = 'u32[]', space=smem, size = 0x4, offset = 0x4, fixed_abs, tag = 'smem constant byte address 0x4 - core index']
  #allocation1 [shape = 'u32[144,128]{1,0:T(1,128)}', space=vmem, size = 0x12000, scoped, tag = 'internal scratch']
  #allocation2 [shape = 'f32[1,1]{1,0:T(1,128)S(6)}', space=smem, size = 0x200, scoped, tag = 'scoped memory for model_forward.1']
  %s0 = inlined_call_operand.vmem [shape: f32[256,128], index: 0, kind: input, shape index: {}]
  %s1 = inlined_call_operand.vmem [shape: f32[256,128], index: 1, kind: input, shape index: {}]
  %s2 = inlined_call_operand.vmem [shape: bf16[128,128], index: 2, kind: input, shape index: {}]
  %s3 = inlined_call_operand.vmem [shape: f32[1,128], index: 3, kind: input, shape index: {}]
  %s4 = inlined_call_operand.vmem [shape: bf16[128,128], index: 4, kind: input, shape index: {}]
  %s5 = inlined_call_operand.vmem [shape: f32[1,128], index: 5, kind: input, shape index: {}]
  %s6 = inlined_call_operand.vmem [shape: f32[1,128], index: 6, kind: input, shape index: {}]
  %s7 = inlined_call_operand.vmem [shape: f32[1,128], index: 7, kind: input, shape index: {}]
  %s8 = inlined_call_operand.<no memory space> [shape: f32[1,1], index: 8, kind: input, shape index: {}]
  %s9 = inlined_call_operand.vmem [shape: f32[1,256], index: 9, kind: output, shape index: {}]
  %s10 = sld [smem:[#allocation0]]
  $region69: #{model_forward.1} parent=0
    _
  %s12 = ssub.s32 1, %s10
  %s13 = scalar_select 0, %s12, %s10
  %14 = sst [smem:[#allocation2]] %s8
  loop: start=0, step=1, limit=4
  $region2: #{model_forward.1} parent=0 // loop_pre_header
    _
  $region3: #{model_forward.1} parent=0 // loop_header
    %s16 = sphi 0, %s20
    %p17 = scmp.ge.s32.totalorder %s16, 4
    %s26 = sphi 0, %s28
    %s29 = sphi 0, %s26
    %s30 = sphi 0, %s29
    %s46 = sphi 0, %s30
    %s52 = sphi 0, %s54
    %s55 = sphi 0, %s52
    %s56 = sphi 0, %s55
    %s72 = sphi 0, %s56
    %s76 = sphi 0, %s76
    %s78 = sphi 0, %s76
    %s79 = sphi 0, %s78
    %s93 = sphi 0, %s79
    %s97 = sphi 0, %s97
    %s99 = sphi 0, %s97
    %s100 = sphi 0, %s99
    %s114 = sphi 0, %s100
    %s118 = sphi 0, %s118
    %s120 = sphi 0, %s118
    %s121 = sphi 0, %s120
    %s135 = sphi 0, %s121
    %s139 = sphi 0, %s139
    %s141 = sphi 0, %s139
    %s142 = sphi 0, %s141
    %s156 = sphi 0, %s142
    %s160 = sphi 0, %s160
    %s162 = sphi 0, %s160
    %s163 = sphi 0, %s162
    %s177 = sphi 0, %s163
    %s181 = sphi 0, %s181
    %s183 = sphi 0, %s181
    %s184 = sphi 0, %s183
    %s198 = sphi 0, %s184
    %s202 = sphi 0, %s202
    %s204 = sphi 0, %s202
    %s205 = sphi 0, %s204
    %s219 = sphi 0, %s205
    %s225 = sphi 0, %s227
    %s228 = sphi 0, %s225
    %s229 = sphi 0, %s228
    %s245 = sphi 0, %s229
  $region4: #{model_forward.1} parent=0 // loop_header_branch
    %19 = sbr.rel (%p17) target = $region8
  $region5: #{model_forward.1} parent=0 // loop_body
    %s21 = ssub.s32 %s16, 1
    %s22 = ssub.s32 %s16, 2
    %s23 = sadd.s32 %s16, 1
    %s24 = ssub.s32 %s16, %s23
    %p25 = scmp.eq.s32.totalorder %s24, 0
    %s27 = sadd.s32 %s26, 1
    %s28 = scalar_select %p25, %s26, %s27
    %p31 = pneg %p25
    %p32 = scmp.eq.s32.totalorder %s16, 1
    %p33 = por %p31, %p32
    %p34 = scmp.ne.s32.totalorder %s26, %s29
    %p35 = scmp.eq.s32.totalorder %s16, 0
    %p36 = por %p34, %p35
    %p37 = scmp.ne.s32.totalorder %s26, %s29
    %p38 = scmp.eq.s32.totalorder %s21, 1
    %p39 = por %p37, %p38
    %p40 = scmp.ne.s32.totalorder %s29, %s30
    %p41 = scmp.eq.s32.totalorder %s21, 0
    %p42 = por %p40, %p41
    %p43 = scmp.ne.s32.totalorder %s29, %s30
    %p44 = scmp.eq.s32.totalorder %s22, 1
    %p45 = por %p43, %p44
    %p47 = scmp.ne.s32.totalorder %s30, %s46
    %p48 = scmp.eq.s32.totalorder %s22, 0
    %p49 = por %p47, %p48
    %s50 = ssub.s32 %s16, %s23
    %p51 = scmp.eq.s32.totalorder %s50, 0
    %s53 = sadd.s32 %s52, 1
    %s54 = scalar_select %p51, %s52, %s53
    %p57 = pneg %p51
    %p58 = scmp.eq.s32.totalorder %s16, 1
    %p59 = por %p57, %p58
    %p60 = scmp.ne.s32.totalorder %s52, %s55
    %p61 = scmp.eq.s32.totalorder %s16, 0
    %p62 = por %p60, %p61
    %p63 = scmp.ne.s32.totalorder %s52, %s55
    %p64 = scmp.eq.s32.totalorder %s21, 1
    %p65 = por %p63, %p64
    %p66 = scmp.ne.s32.totalorder %s55, %s56
    %p67 = scmp.eq.s32.totalorder %s21, 0
    %p68 = por %p66, %p67
    %p69 = scmp.ne.s32.totalorder %s55, %s56
    %p70 = scmp.eq.s32.totalorder %s22, 1
    %p71 = por %p69, %p70
    %p73 = scmp.ne.s32.totalorder %s56, %s72
    %p74 = scmp.eq.s32.totalorder %s22, 0
    %p75 = por %p73, %p74
    %s77 = sadd.s32 %s76, 1
    %p80 = scmp.eq.s32.totalorder %s16, 1
    %p81 = scmp.ne.s32.totalorder %s76, %s78
    %p82 = scmp.eq.s32.totalorder %s16, 0
    %p83 = por %p81, %p82
    %p84 = scmp.ne.s32.totalorder %s76, %s78
    %p85 = scmp.eq.s32.totalorder %s21, 1
    %p86 = por %p84, %p85
    %p87 = scmp.ne.s32.totalorder %s78, %s79
    %p88 = scmp.eq.s32.totalorder %s21, 0
    %p89 = por %p87, %p88
    %p90 = scmp.ne.s32.totalorder %s78, %s79
    %p91 = scmp.eq.s32.totalorder %s22, 1
    %p92 = por %p90, %p91
    %p94 = scmp.ne.s32.totalorder %s79, %s93
    %p95 = scmp.eq.s32.totalorder %s22, 0
    %p96 = por %p94, %p95
    %s98 = sadd.s32 %s97, 1
    %p101 = scmp.eq.s32.totalorder %s16, 1
    %p102 = scmp.ne.s32.totalorder %s97, %s99
    %p103 = scmp.eq.s32.totalorder %s16, 0
    %p104 = por %p102, %p103
    %p105 = scmp.ne.s32.totalorder %s97, %s99
    %p106 = scmp.eq.s32.totalorder %s21, 1
    %p107 = por %p105, %p106
    %p108 = scmp.ne.s32.totalorder %s99, %s100
    %p109 = scmp.eq.s32.totalorder %s21, 0
    %p110 = por %p108, %p109
    %p111 = scmp.ne.s32.totalorder %s99, %s100
    %p112 = scmp.eq.s32.totalorder %s22, 1
    %p113 = por %p111, %p112
    %p115 = scmp.ne.s32.totalorder %s100, %s114
    %p116 = scmp.eq.s32.totalorder %s22, 0
    %p117 = por %p115, %p116
    %s119 = sadd.s32 %s118, 1
    %p122 = scmp.eq.s32.totalorder %s16, 1
    %p123 = scmp.ne.s32.totalorder %s118, %s120
    %p124 = scmp.eq.s32.totalorder %s16, 0
    %p125 = por %p123, %p124
    %p126 = scmp.ne.s32.totalorder %s118, %s120
    %p127 = scmp.eq.s32.totalorder %s21, 1
    %p128 = por %p126, %p127
    %p129 = scmp.ne.s32.totalorder %s120, %s121
    %p130 = scmp.eq.s32.totalorder %s21, 0
    %p131 = por %p129, %p130
    %p132 = scmp.ne.s32.totalorder %s120, %s121
    %p133 = scmp.eq.s32.totalorder %s22, 1
    %p134 = por %p132, %p133
    %p136 = scmp.ne.s32.totalorder %s121, %s135
    %p137 = scmp.eq.s32.totalorder %s22, 0
    %p138 = por %p136, %p137
    %s140 = sadd.s32 %s139, 1
    %p143 = scmp.eq.s32.totalorder %s16, 1
    %p144 = scmp.ne.s32.totalorder %s139, %s141
    %p145 = scmp.eq.s32.totalorder %s16, 0
    %p146 = por %p144, %p145
    %p147 = scmp.ne.s32.totalorder %s139, %s141
    %p148 = scmp.eq.s32.totalorder %s21, 1
    %p149 = por %p147, %p148
    %p150 = scmp.ne.s32.totalorder %s141, %s142
    %p151 = scmp.eq.s32.totalorder %s21, 0
    %p152 = por %p150, %p151
    %p153 = scmp.ne.s32.totalorder %s141, %s142
    %p154 = scmp.eq.s32.totalorder %s22, 1
    %p155 = por %p153, %p154
    %p157 = scmp.ne.s32.totalorder %s142, %s156
    %p158 = scmp.eq.s32.totalorder %s22, 0
    %p159 = por %p157, %p158
    %s161 = sadd.s32 %s160, 1
    %p164 = scmp.eq.s32.totalorder %s16, 1
    %p165 = scmp.ne.s32.totalorder %s160, %s162
    %p166 = scmp.eq.s32.totalorder %s16, 0
    %p167 = por %p165, %p166
    %p168 = scmp.ne.s32.totalorder %s160, %s162
    %p169 = scmp.eq.s32.totalorder %s21, 1
    %p170 = por %p168, %p169
    %p171 = scmp.ne.s32.totalorder %s162, %s163
    %p172 = scmp.eq.s32.totalorder %s21, 0
    %p173 = por %p171, %p172
    %p174 = scmp.ne.s32.totalorder %s162, %s163
    %p175 = scmp.eq.s32.totalorder %s22, 1
    %p176 = por %p174, %p175
    %p178 = scmp.ne.s32.totalorder %s163, %s177
    %p179 = scmp.eq.s32.totalorder %s22, 0
    %p180 = por %p178, %p179
    %s182 = sadd.s32 %s181, 1
    %p185 = scmp.eq.s32.totalorder %s16, 1
    %p186 = scmp.ne.s32.totalorder %s181, %s183
    %p187 = scmp.eq.s32.totalorder %s16, 0
    %p188 = por %p186, %p187
    %p189 = scmp.ne.s32.totalorder %s181, %s183
    %p190 = scmp.eq.s32.totalorder %s21, 1
    %p191 = por %p189, %p190
    %p192 = scmp.ne.s32.totalorder %s183, %s184
    %p193 = scmp.eq.s32.totalorder %s21, 0
    %p194 = por %p192, %p193
    %p195 = scmp.ne.s32.totalorder %s183, %s184
    %p196 = scmp.eq.s32.totalorder %s22, 1
    %p197 = por %p195, %p196
    %p199 = scmp.ne.s32.totalorder %s184, %s198
    %p200 = scmp.eq.s32.totalorder %s22, 0
    %p201 = por %p199, %p200
    %s203 = sadd.s32 %s202, 1
    %p206 = scmp.eq.s32.totalorder %s16, 1
    %p207 = scmp.ne.s32.totalorder %s202, %s204
    %p208 = scmp.eq.s32.totalorder %s16, 0
    %p209 = por %p207, %p208
    %p210 = scmp.ne.s32.totalorder %s202, %s204
    %p211 = scmp.eq.s32.totalorder %s21, 1
    %p212 = por %p210, %p211
    %p213 = scmp.ne.s32.totalorder %s204, %s205
    %p214 = scmp.eq.s32.totalorder %s21, 0
    %p215 = por %p213, %p214
    %p216 = scmp.ne.s32.totalorder %s204, %s205
    %p217 = scmp.eq.s32.totalorder %s22, 1
    %p218 = por %p216, %p217
    %p220 = scmp.ne.s32.totalorder %s205, %s219
    %p221 = scmp.eq.s32.totalorder %s22, 0
    %p222 = por %p220, %p221
    %s223 = ssub.s32 %s16, %s23
    %p224 = scmp.eq.s32.totalorder %s223, 0
    %s226 = sadd.s32 %s225, 1
    %s227 = scalar_select %p224, %s225, %s226
    %p230 = pneg %p224
    %p231 = scmp.eq.s32.totalorder %s16, 1
    %p232 = por %p230, %p231
    %p233 = scmp.ne.s32.totalorder %s225, %s228
    %p234 = scmp.eq.s32.totalorder %s16, 0
    %p235 = por %p233, %p234
    %p236 = scmp.ne.s32.totalorder %s225, %s228
    %p237 = scmp.eq.s32.totalorder %s21, 1
    %p238 = por %p236, %p237
    %p239 = scmp.ne.s32.totalorder %s228, %s229
    %p240 = scmp.eq.s32.totalorder %s21, 0
    %p241 = por %p239, %p240
    %p242 = scmp.ne.s32.totalorder %s228, %s229
    %p243 = scmp.eq.s32.totalorder %s22, 1
    %p244 = por %p242, %p243
    %p246 = scmp.ne.s32.totalorder %s229, %s245
    %p247 = scmp.eq.s32.totalorder %s22, 0
    %p248 = por %p246, %p247
    %p249 = scmp.le.s32.totalorder 1, %s16
    %p250 = scmp.lt.s32.totalorder %s16, 3
    %p251 = pnand %p249, %p250
    %p252 = pneg %p251
    // Predicated region
    $region9: #{model_forward.1} parent=5 // pred_check
      _
    $region10: #{model_forward.1} parent=5 // pred_check_branch
      %254 = sbr.rel (%p251) target = $region12
    $region11: #{model_forward.1} parent=5 // pred_region
      %s255 = ssub.s32 %s16, 1
      // Predicated region
      $region13: #{model_forward.1} parent=11 // pred_check
        %p256 = pneg %p89
      $region14: #{model_forward.1} parent=11 // pred_check_branch
        %258 = sbr.rel (%p256) target = $region16
      $region15: #{model_forward.1} parent=11 // pred_region
        _
      $region16: #{model_forward.1} parent=11 // pred_fallthru
        _
      // Predicated region
      $region17: #{model_forward.1} parent=11 // pred_check
        %p259 = pneg %p110
      $region18: #{model_forward.1} parent=11 // pred_check_branch
        %261 = sbr.rel (%p259) target = $region20
      $region19: #{model_forward.1} parent=11 // pred_region
        _
      $region20: #{model_forward.1} parent=11 // pred_fallthru
        _
      // Predicated region
      $region21: #{model_forward.1} parent=11 // pred_check
        %p262 = pneg %p131
      $region22: #{model_forward.1} parent=11 // pred_check_branch
        %264 = sbr.rel (%p262) target = $region24
      $region23: #{model_forward.1} parent=11 // pred_region
        _
      $region24: #{model_forward.1} parent=11 // pred_fallthru
        _
      // Predicated region
      $region25: #{model_forward.1} parent=11 // pred_check
        %p265 = pneg %p152
      $region26: #{model_forward.1} parent=11 // pred_check_branch
        %267 = sbr.rel (%p265) target = $region28
      $region27: #{model_forward.1} parent=11 // pred_region
        _
      $region28: #{model_forward.1} parent=11 // pred_fallthru
        _
      // Predicated region
      $region29: #{model_forward.1} parent=11 // pred_check
        %p268 = pneg %p173
      $region30: #{model_forward.1} parent=11 // pred_check_branch
        %270 = sbr.rel (%p268) target = $region32
      $region31: #{model_forward.1} parent=11 // pred_region
        _
      $region32: #{model_forward.1} parent=11 // pred_fallthru
        _
      // Predicated region
      $region33: #{model_forward.1} parent=11 // pred_check
        %p271 = pneg %p194
      $region34: #{model_forward.1} parent=11 // pred_check_branch
        %273 = sbr.rel (%p271) target = $region36
      $region35: #{model_forward.1} parent=11 // pred_region
        _
      $region36: #{model_forward.1} parent=11 // pred_fallthru
        _
      // Predicated region
      $region37: #{model_forward.1} parent=11 // pred_check
        %p274 = pneg %p215
      $region38: #{model_forward.1} parent=11 // pred_check_branch
        %276 = sbr.rel (%p274) target = $region40
      $region39: #{model_forward.1} parent=11 // pred_region
        _
      $region40: #{model_forward.1} parent=11 // pred_fallthru
        _
    $region12: #{model_forward.1} parent=5 // pred_fallthru
      _
    %p277 = scmp.lt.s32.totalorder %s16, 2
    // Predicated region
    $region41: #{model_forward.1} parent=5 // pred_check
      %p278 = pneg %p277
    $region42: #{model_forward.1} parent=5 // pred_check_branch
      %280 = sbr.rel (%p278) target = $region44
    $region43: #{model_forward.1} parent=5 // pred_region
      // Predicated region
      $region45: #{model_forward.1} parent=43 // pred_check
        %p281 = pneg %p36
      $region46: #{model_forward.1} parent=43 // pred_check_branch
        %283 = sbr.rel (%p281) target = $region48
      $region47: #{model_forward.1} parent=43 // pred_region
        %s284 = smul.u32 16, %s16
        %p285 = scmp.lt.s32.totalorder %s284, 31
        %s286 = scalar_select %p285, %s284, 31
        %s287 = smul.addr %s286, 8
        %s288 = scalar_lea.vmem %s0, %s287
        %s289 = smul.u32 16, %s16
      $region48: #{model_forward.1} parent=43 // pred_fallthru
        _
      // Predicated region
      $region49: #{model_forward.1} parent=43 // pred_check
        %p290 = pneg %p62
      $region50: #{model_forward.1} parent=43 // pred_check_branch
        %292 = sbr.rel (%p290) target = $region52
      $region51: #{model_forward.1} parent=43 // pred_region
        %s293 = smul.u32 16, %s16
        %p294 = scmp.lt.s32.totalorder %s293, 31
        %s295 = scalar_select %p294, %s293, 31
        %s296 = smul.addr %s295, 8
        %s297 = scalar_lea.vmem %s1, %s296
        %s298 = smul.u32 16, %s16
      $region52: #{model_forward.1} parent=43 // pred_fallthru
        _
    $region44: #{model_forward.1} parent=5 // pred_fallthru
      _
    %p299 = scmp.le.s32.totalorder 1, %s16
    %p300 = scmp.lt.s32.totalorder %s16, 3
    %p301 = pnand %p299, %p300
    %p302 = pneg %p301
    // Predicated region
    $region53: #{model_forward.1} parent=5 // pred_check
      _
    $region54: #{model_forward.1} parent=5 // pred_check_branch
      %304 = sbr.rel (%p301) target = $region56
    $region55: #{model_forward.1} parent=5 // pred_region
      %s305 = ssub.s32 %s16, 1
      %s306 = smul.u32 16, %s21
      %p307 = scmp.lt.s32.totalorder %s306, 31
      %s308 = scalar_select %p307, %s306, 31
      %s309 = smul.addr %s308, 8
      %s310 = scalar_lea.vmem %s0, %s309
      %p311 = pneg %p42
      %p312 = pneg %p39
      %s313 = smul.u32 16, %s21
      %p314 = scmp.lt.s32.totalorder %s313, 31
      %s315 = scalar_select %p314, %s313, 31
      %s316 = smul.addr %s315, 8
      %s317 = scalar_lea.vmem %s1, %s316
      %p318 = pneg %p68
      %p319 = pneg %p65
      %p320 = pneg %p89
      %p321 = pneg %p86
      %p322 = pneg %p110
      %p323 = pneg %p107
      %p324 = pneg %p131
      %p325 = pneg %p128
      %p326 = pneg %p152
      %p327 = pneg %p149
      %p328 = pneg %p173
      %p329 = pneg %p170
      %p330 = pneg %p194
      %p331 = pneg %p191
      %p332 = pneg %p215
      %p333 = pneg %p212
      %p334 = pneg %p241
      %p335 = pneg %p238
      %p336 = scmp.lt.s32.totalorder %s21, 1
      %s337 = scalar_select %p336, %s21, 1
      %s338 = scalar_lea.vmem %s9, %s337
      %s339 = smul.u32 16, %s21
      %p340 = scmp.lt.s32.totalorder %s339, 31
      %s341 = scalar_select %p340, %s339, 31
      %s342 = smul.addr %s341, 8
      %s343 = scalar_lea.vmem %s0, %s342
      %s344 = smul.u32 16, %s21
      %s345 = smul.u32 16, %s21
      %p346 = scmp.lt.s32.totalorder %s345, 31
      %s347 = scalar_select %p346, %s345, 31
      %s348 = smul.addr %s347, 8
      %s349 = scalar_lea.vmem %s1, %s348
      %s350 = smul.u32 16, %s21
      %p351 = scmp.lt.s32.totalorder %s21, 1
      %s352 = scalar_select %p351, %s21, 1
      %s353 = scalar_lea.vmem %s9, %s352
      %v355 = vld [vmem:[%s343] sm:$0xff]
      %v356 = vld [vmem:[%s343 + $0x8] sm:$0xff]
      %v357 = vld [vmem:[%s343 + $0x10] sm:$0xff]
      %v358 = vld [vmem:[%s343 + $0x18] sm:$0xff]
      %v359 = vld [vmem:[%s343 + $0x20] sm:$0xff]
      %v360 = vld [vmem:[%s343 + $0x28] sm:$0xff]
      %v361 = vld [vmem:[%s343 + $0x30] sm:$0xff]
      %v362 = vld [vmem:[%s343 + $0x38] sm:$0xff]
      %v363 = vld [vmem:[%s343 + $0x40] sm:$0xff]
      %v364 = vld [vmem:[%s343 + $0x48] sm:$0xff]
      %v365 = vld [vmem:[%s343 + $0x50] sm:$0xff]
      %v366 = vld [vmem:[%s343 + $0x58] sm:$0xff]
      %v367 = vld [vmem:[%s343 + $0x60] sm:$0xff]
      %v368 = vld [vmem:[%s343 + $0x68] sm:$0xff]
      %v369 = vld [vmem:[%s343 + $0x70] sm:$0xff]
      %v370 = vld [vmem:[%s343 + $0x78] sm:$0xff]
      %v371 = vpack.c.bf16 %v356, %v355
      %v372 = vpack.c.bf16 %v358, %v357
      %v373 = vpack.c.bf16 %v360, %v359
      %v374 = vpack.c.bf16 %v362, %v361
      %v375 = vpack.c.bf16 %v364, %v363
      %v376 = vpack.c.bf16 %v366, %v365
      %v377 = vpack.c.bf16 %v368, %v367
      %v378 = vpack.c.bf16 %v370, %v369
      %v379 = vld [vmem:[%s2] sm:$0xf]
      %v380 = vld [vmem:[%s2 + $0x4] sm:$0xf]
      %v381 = vld [vmem:[%s2 + $0x8] sm:$0xf]
      %v382 = vld [vmem:[%s2 + $0xc] sm:$0xf]
      %v383 = vld [vmem:[%s2 + $0x10] sm:$0xf]
      %v384 = vld [vmem:[%s2 + $0x14] sm:$0xf]
      %v385 = vld [vmem:[%s2 + $0x18] sm:$0xf]
      %v386 = vld [vmem:[%s2 + $0x1c] sm:$0xf]
      %v387 = vld [vmem:[%s2 + $0x20] sm:$0xf]
      %v388 = vld [vmem:[%s2 + $0x24] sm:$0xf]
      %v389 = vld [vmem:[%s2 + $0x28] sm:$0xf]
      %v390 = vld [vmem:[%s2 + $0x2c] sm:$0xf]
      %v391 = vld [vmem:[%s2 + $0x30] sm:$0xf]
      %v392 = vld [vmem:[%s2 + $0x34] sm:$0xf]
      %v393 = vld [vmem:[%s2 + $0x38] sm:$0xf]
      %v394 = vld [vmem:[%s2 + $0x3c] sm:$0xf]
      %v395 = vld [vmem:[%s3] sm:$0x1]
      %v397 = vlaneseq
      %v398 = vshrl.u32 %v397, 7
      %v399 = vsub.s32 0, %v398
      %v400 = vrot.slane %v395, %v399
      %v418 = vunpack.c.l.b16 %v379
      %v419 = vunpack.c.l.b16 %v380
      %v420 = vunpack.c.l.b16 %v381
      %v421 = vunpack.c.l.b16 %v382
      %v422 = vunpack.c.l.b16 %v383
      %v423 = vunpack.c.l.b16 %v384
      %v424 = vunpack.c.l.b16 %v385
      %v425 = vunpack.c.l.b16 %v386
      %v426 = vunpack.c.l.b16 %v387
      %v427 = vunpack.c.l.b16 %v388
      %v428 = vunpack.c.l.b16 %v389
      %v429 = vunpack.c.l.b16 %v390
      %v430 = vunpack.c.l.b16 %v391
      %v431 = vunpack.c.l.b16 %v392
      %v432 = vunpack.c.l.b16 %v393
      %v433 = vunpack.c.l.b16 %v394
      %v434 = vpack.c.b16 %v419, %v418
      %v435 = vpack.c.b16 %v421, %v420
      %v436 = vpack.c.b16 %v423, %v422
      %v437 = vpack.c.b16 %v425, %v424
      %v438 = vpack.c.b16 %v427, %v426
      %v439 = vpack.c.b16 %v429, %v428
      %v440 = vpack.c.b16 %v431, %v430
      %v441 = vpack.c.b16 %v433, %v432
      %450 = vmatprep.subr.bf16.mxu0 0
      %451 = vmatpush1.bf16.msra.mxu0 %v434
      %452 = vmatprep.subr.bf16.mxu0 0
      %453 = vmatpush1.bf16.msra.mxu0 %v435
      %454 = vmatprep.subr.bf16.mxu0 0
      %455 = vmatpush1.bf16.msra.mxu0 %v436
      %456 = vmatprep.subr.bf16.mxu0 0
      %457 = vmatpush1.bf16.msra.mxu0 %v437
      %458 = vmatprep.subr.bf16.mxu0 0
      %459 = vmatpush1.bf16.msra.mxu0 %v438
      %460 = vmatprep.subr.bf16.mxu0 0
      %461 = vmatpush1.bf16.msra.mxu0 %v439
      %462 = vmatprep.subr.bf16.mxu0 0
      %463 = vmatpush1.bf16.msra.mxu0 %v440
      %464 = vmatprep.subr.bf16.mxu0 0
      %465 = vmatpush1.bf16.msra.mxu0 %v441
      %466 = vmatprep.subr.bf16.mxu0 0
      %467 = vmatpush1.bf16.msra.mxu0 0
      %468 = vmatprep.subr.bf16.mxu0 0
      %469 = vmatpush1.bf16.msra.mxu0 0
      %470 = vmatprep.subr.bf16.mxu0 0
      %471 = vmatpush1.bf16.msra.mxu0 0
      %472 = vmatprep.subr.bf16.mxu0 0
      %473 = vmatpush1.bf16.msra.mxu0 0
      %474 = vmatprep.subr.bf16.mxu0 0
      %475 = vmatpush1.bf16.msra.mxu0 0
      %476 = vmatprep.subr.bf16.mxu0 0
      %477 = vmatpush1.bf16.msra.mxu0 0
      %478 = vmatprep.subr.bf16.mxu0 0
      %479 = vmatpush1.bf16.msra.mxu0 0
      %480 = vmatprep.subr.bf16.mxu0 0
      %481 = vmatpush1.bf16.msra.mxu0 0
      %482 = vmatprep.mubr.bf16.mxu0 0
      %483 = vmatmul.mubr.bf16.gmra.mrb[0].mxu0 %v371
      %v484 = vpop.f32.mrb[0].mxu0
      %v485 = vadd.f32 %v400, %v484
      %v486 = vpop.f32.mrb[0].mxu0
      %v487 = vpop.f32.mrb[0].mxu0
      %v488 = vadd.f32 %v400, %v487
      %v489 = vpop.f32.mrb[0].mxu0
      %490 = vmatprep.mubr.bf16.mxu0 0
      %491 = vmatmul.mubr.bf16.gmra.mrb[0].mxu0 %v372
      %v492 = vpop.f32.mrb[0].mxu0
      %v493 = vadd.f32 %v400, %v492
      %v494 = vpop.f32.mrb[0].mxu0
      %v495 = vpop.f32.mrb[0].mxu0
      %v496 = vadd.f32 %v400, %v495
      %v497 = vpop.f32.mrb[0].mxu0
      %498 = vmatprep.mubr.bf16.mxu0 0
      %499 = vmatmul.mubr.bf16.gmra.mrb[0].mxu0 %v373
      %v500 = vpop.f32.mrb[0].mxu0
      %v501 = vadd.f32 %v400, %v500
      %v502 = vpop.f32.mrb[0].mxu0
      %v503 = vpop.f32.mrb[0].mxu0
      %v504 = vadd.f32 %v400, %v503
      %v505 = vpop.f32.mrb[0].mxu0
      %506 = vmatprep.mubr.bf16.mxu0 0
      %507 = vmatmul.mubr.bf16.gmra.mrb[0].mxu0 %v374
      %v508 = vpop.f32.mrb[0].mxu0
      %v509 = vadd.f32 %v400, %v508
      %v510 = vpop.f32.mrb[0].mxu0
      %v511 = vpop.f32.mrb[0].mxu0
      %v512 = vadd.f32 %v400, %v511
      %v513 = vpop.f32.mrb[0].mxu0
      %514 = vmatprep.mubr.bf16.mxu0 0
      %515 = vmatmul.mubr.bf16.gmra.mrb[0].mxu0 %v375
      %v516 = vpop.f32.mrb[0].mxu0
      %v517 = vadd.f32 %v400, %v516
      %v518 = vpop.f32.mrb[0].mxu0
      %v519 = vpop.f32.mrb[0].mxu0
      %v520 = vadd.f32 %v400, %v519
      %v521 = vpop.f32.mrb[0].mxu0
      %522 = vmatprep.mubr.bf16.mxu0 0
      %523 = vmatmul.mubr.bf16.gmra.mrb[0].mxu0 %v376
      %v524 = vpop.f32.mrb[0].mxu0
      %v525 = vadd.f32 %v400, %v524
      %v526 = vpop.f32.mrb[0].mxu0
      %v527 = vpop.f32.mrb[0].mxu0
      %v528 = vadd.f32 %v400, %v527
      %v529 = vpop.f32.mrb[0].mxu0
      %530 = vmatprep.mubr.bf16.mxu0 0
      %531 = vmatmul.mubr.bf16.gmra.mrb[0].mxu0 %v377
      %v532 = vpop.f32.mrb[0].mxu0
      %v533 = vadd.f32 %v400, %v532
      %v534 = vpop.f32.mrb[0].mxu0
      %v535 = vpop.f32.mrb[0].mxu0
      %v536 = vadd.f32 %v400, %v535
      %v537 = vpop.f32.mrb[0].mxu0
      %538 = vmatprep.mubr.bf16.mxu0 0
      %539 = vmatmul.mubr.bf16.gmra.mrb[0].mxu0 %v378
      %v540 = vpop.f32.mrb[0].mxu0
      %v541 = vadd.f32 %v400, %v540
      %v542 = vpop.f32.mrb[0].mxu0
      %v543 = vpop.f32.mrb[0].mxu0
      %v544 = vadd.f32 %v400, %v543
      %v545 = vpop.f32.mrb[0].mxu0
      %546 = vdwg.mxu0
      %v547 = vmax.f32 %v485, 0.0
      %v548 = vmax.f32 %v488, 0.0
      %v549 = vmax.f32 %v493, 0.0
      %v550 = vmax.f32 %v496, 0.0
      %v551 = vmax.f32 %v501, 0.0
      %v552 = vmax.f32 %v504, 0.0
      %v553 = vmax.f32 %v509, 0.0
      %v554 = vmax.f32 %v512, 0.0
      %v555 = vmax.f32 %v517, 0.0
      %v556 = vmax.f32 %v520, 0.0
      %v557 = vmax.f32 %v525, 0.0
      %v558 = vmax.f32 %v528, 0.0
      %v559 = vmax.f32 %v533, 0.0
      %v560 = vmax.f32 %v536, 0.0
      %v561 = vmax.f32 %v541, 0.0
      %v562 = vmax.f32 %v544, 0.0
      %v563 = vld [vmem:[%s349] sm:$0xff]
      %v564 = vld [vmem:[%s349 + $0x8] sm:$0xff]
      %v565 = vld [vmem:[%s349 + $0x10] sm:$0xff]
      %v566 = vld [vmem:[%s349 + $0x18] sm:$0xff]
      %v567 = vld [vmem:[%s349 + $0x20] sm:$0xff]
      %v568 = vld [vmem:[%s349 + $0x28] sm:$0xff]
      %v569 = vld [vmem:[%s349 + $0x30] sm:$0xff]
      %v570 = vld [vmem:[%s349 + $0x38] sm:$0xff]
      %v571 = vld [vmem:[%s349 + $0x40] sm:$0xff]
      %v572 = vld [vmem:[%s349 + $0x48] sm:$0xff]
      %v573 = vld [vmem:[%s349 + $0x50] sm:$0xff]
      %v574 = vld [vmem:[%s349 + $0x58] sm:$0xff]
      %v575 = vld [vmem:[%s349 + $0x60] sm:$0xff]
      %v576 = vld [vmem:[%s349 + $0x68] sm:$0xff]
      %v577 = vld [vmem:[%s349 + $0x70] sm:$0xff]
      %v578 = vld [vmem:[%s349 + $0x78] sm:$0xff]
      %v579 = vpack.c.bf16 %v564, %v563
      %v580 = vpack.c.bf16 %v566, %v565
      %v581 = vpack.c.bf16 %v568, %v567
      %v582 = vpack.c.bf16 %v570, %v569
      %v583 = vpack.c.bf16 %v572, %v571
      %v584 = vpack.c.bf16 %v574, %v573
      %v585 = vpack.c.bf16 %v576, %v575
      %v586 = vpack.c.bf16 %v578, %v577
      %v587 = vld [vmem:[%s4] sm:$0xf]
      %v588 = vld [vmem:[%s4 + $0x4] sm:$0xf]
      %v589 = vld [vmem:[%s4 + $0x8] sm:$0xf]
      %v590 = vld [vmem:[%s4 + $0xc] sm:$0xf]
      %v591 = vld [vmem:[%s4 + $0x10] sm:$0xf]
      %v592 = vld [vmem:[%s4 + $0x14] sm:$0xf]
      %v593 = vld [vmem:[%s4 + $0x18] sm:$0xf]
      %v594 = vld [vmem:[%s4 + $0x1c] sm:$0xf]
      %v595 = vld [vmem:[%s4 + $0x20] sm:$0xf]
      %v596 = vld [vmem:[%s4 + $0x24] sm:$0xf]
      %v597 = vld [vmem:[%s4 + $0x28] sm:$0xf]
      %v598 = vld [vmem:[%s4 + $0x2c] sm:$0xf]
      %v599 = vld [vmem:[%s4 + $0x30] sm:$0xf]
      %v600 = vld [vmem:[%s4 + $0x34] sm:$0xf]
      %v601 = vld [vmem:[%s4 + $0x38] sm:$0xf]
      %v602 = vld [vmem:[%s4 + $0x3c] sm:$0xf]
      %v603 = vld [vmem:[%s5] sm:$0x1]
      %v605 = vlaneseq
      %v606 = vshrl.u32 %v605, 7
      %v607 = vsub.s32 0, %v606
      %v608 = vrot.slane %v603, %v607
      %v626 = vunpack.c.l.b16 %v587
      %v627 = vunpack.c.l.b16 %v588
      %v628 = vunpack.c.l.b16 %v589
      %v629 = vunpack.c.l.b16 %v590
      %v630 = vunpack.c.l.b16 %v591
      %v631 = vunpack.c.l.b16 %v592
      %v632 = vunpack.c.l.b16 %v593
      %v633 = vunpack.c.l.b16 %v594
      %v634 = vunpack.c.l.b16 %v595
      %v635 = vunpack.c.l.b16 %v596
      %v636 = vunpack.c.l.b16 %v597
      %v637 = vunpack.c.l.b16 %v598
      %v638 = vunpack.c.l.b16 %v599
      %v639 = vunpack.c.l.b16 %v600
      %v640 = vunpack.c.l.b16 %v601
      %v641 = vunpack.c.l.b16 %v602
      %v642 = vpack.c.b16 %v627, %v626
      %v643 = vpack.c.b16 %v629, %v628
      %v644 = vpack.c.b16 %v631, %v630
      %v645 = vpack.c.b16 %v633, %v632
      %v646 = vpack.c.b16 %v635, %v634
      %v647 = vpack.c.b16 %v637, %v636
      %v648 = vpack.c.b16 %v639, %v638
      %v649 = vpack.c.b16 %v641, %v640
      %658 = vmatprep.subr.bf16.mxu0 0
      %659 = vmatpush1.bf16.msra.mxu0 %v642
      %660 = vmatprep.subr.bf16.mxu0 0
      %661 = vmatpush1.bf16.msra.mxu0 %v643
      %662 = vmatprep.subr.bf16.mxu0 0
      %663 = vmatpush1.bf16.msra.mxu0 %v644
      %664 = vmatprep.subr.bf16.mxu0 0
      %665 = vmatpush1.bf16.msra.mxu0 %v645
      %666 = vmatprep.subr.bf16.mxu0 0
      %667 = vmatpush1.bf16.msra.mxu0 %v646
      %668 = vmatprep.subr.bf16.mxu0 0
      %669 = vmatpush1.bf16.msra.mxu0 %v647
      %670 = vmatprep.subr.bf16.mxu0 0
      %671 = vmatpush1.bf16.msra.mxu0 %v648
      %672 = vmatprep.subr.bf16.mxu0 0
      %673 = vmatpush1.bf16.msra.mxu0 %v649
      %674 = vmatprep.subr.bf16.mxu0 0
      %675 = vmatpush1.bf16.msra.mxu0 0
      %676 = vmatprep.subr.bf16.mxu0 0
      %677 = vmatpush1.bf16.msra.mxu0 0
      %678 = vmatprep.subr.bf16.mxu0 0
      %679 = vmatpush1.bf16.msra.mxu0 0
      %680 = vmatprep.subr.bf16.mxu0 0
      %681 = vmatpush1.bf16.msra.mxu0 0
      %682 = vmatprep.subr.bf16.mxu0 0
      %683 = vmatpush1.bf16.msra.mxu0 0
      %684 = vmatprep.subr.bf16.mxu0 0
      %685 = vmatpush1.bf16.msra.mxu0 0
      %686 = vmatprep.subr.bf16.mxu0 0
      %687 = vmatpush1.bf16.msra.mxu0 0
      %688 = vmatprep.subr.bf16.mxu0 0
      %689 = vmatpush1.bf16.msra.mxu0 0
      %690 = vmatprep.mubr.bf16.mxu0 0
      %691 = vmatmul.mubr.bf16.gmra.mrb[0].mxu0 %v579
      %v692 = vpop.f32.mrb[0].mxu0
      %v693 = vadd.f32 %v608, %v692
      %v694 = vpop.f32.mrb[0].mxu0
      %v695 = vpop.f32.mrb[0].mxu0
      %v696 = vadd.f32 %v608, %v695
      %v697 = vpop.f32.mrb[0].mxu0
      %698 = vmatprep.mubr.bf16.mxu0 0
      %699 = vmatmul.mubr.bf16.gmra.mrb[0].mxu0 %v580
      %v700 = vpop.f32.mrb[0].mxu0
      %v701 = vadd.f32 %v608, %v700
      %v702 = vpop.f32.mrb[0].mxu0
      %v703 = vpop.f32.mrb[0].mxu0
      %v704 = vadd.f32 %v608, %v703
      %v705 = vpop.f32.mrb[0].mxu0
      %706 = vmatprep.mubr.bf16.mxu0 0
      %707 = vmatmul.mubr.bf16.gmra.mrb[0].mxu0 %v581
      %v708 = vpop.f32.mrb[0].mxu0
      %v709 = vadd.f32 %v608, %v708
      %v710 = vpop.f32.mrb[0].mxu0
      %v711 = vpop.f32.mrb[0].mxu0
      %v712 = vadd.f32 %v608, %v711
      %v713 = vpop.f32.mrb[0].mxu0
      %714 = vmatprep.mubr.bf16.mxu0 0
      %715 = vmatmul.mubr.bf16.gmra.mrb[0].mxu0 %v582
      %v716 = vpop.f32.mrb[0].mxu0
      %v717 = vadd.f32 %v608, %v716
      %v718 = vpop.f32.mrb[0].mxu0
      %v719 = vpop.f32.mrb[0].mxu0
      %v720 = vadd.f32 %v608, %v719
      %v721 = vpop.f32.mrb[0].mxu0
      %722 = vmatprep.mubr.bf16.mxu0 0
      %723 = vmatmul.mubr.bf16.gmra.mrb[0].mxu0 %v583
      %v724 = vpop.f32.mrb[0].mxu0
      %v725 = vadd.f32 %v608, %v724
      %v726 = vpop.f32.mrb[0].mxu0
      %v727 = vpop.f32.mrb[0].mxu0
      %v728 = vadd.f32 %v608, %v727
      %v729 = vpop.f32.mrb[0].mxu0
      %730 = vmatprep.mubr.bf16.mxu0 0
      %731 = vmatmul.mubr.bf16.gmra.mrb[0].mxu0 %v584
      %v732 = vpop.f32.mrb[0].mxu0
      %v733 = vadd.f32 %v608, %v732
      %v734 = vpop.f32.mrb[0].mxu0
      %v735 = vpop.f32.mrb[0].mxu0
      %v736 = vadd.f32 %v608, %v735
      %v737 = vpop.f32.mrb[0].mxu0
      %738 = vmatprep.mubr.bf16.mxu0 0
      %739 = vmatmul.mubr.bf16.gmra.mrb[0].mxu0 %v585
      %v740 = vpop.f32.mrb[0].mxu0
      %v741 = vadd.f32 %v608, %v740
      %v742 = vpop.f32.mrb[0].mxu0
      %v743 = vpop.f32.mrb[0].mxu0
      %v744 = vadd.f32 %v608, %v743
      %v745 = vpop.f32.mrb[0].mxu0
      %746 = vmatprep.mubr.bf16.mxu0 0
      %747 = vmatmul.mubr.bf16.gmra.mrb[0].mxu0 %v586
      %v748 = vpop.f32.mrb[0].mxu0
      %v749 = vadd.f32 %v608, %v748
      %v750 = vpop.f32.mrb[0].mxu0
      %v751 = vpop.f32.mrb[0].mxu0
      %v752 = vadd.f32 %v608, %v751
      %v753 = vpop.f32.mrb[0].mxu0
      %754 = vdwg.mxu0
      %v755 = vmax.f32 %v693, 0.0
      %v756 = vmax.f32 %v696, 0.0
      %v757 = vmax.f32 %v701, 0.0
      %v758 = vmax.f32 %v704, 0.0
      %v759 = vmax.f32 %v709, 0.0
      %v760 = vmax.f32 %v712, 0.0
      %v761 = vmax.f32 %v717, 0.0
      %v762 = vmax.f32 %v720, 0.0
      %v763 = vmax.f32 %v725, 0.0
      %v764 = vmax.f32 %v728, 0.0
      %v765 = vmax.f32 %v733, 0.0
      %v766 = vmax.f32 %v736, 0.0
      %v767 = vmax.f32 %v741, 0.0
      %v768 = vmax.f32 %v744, 0.0
      %v769 = vmax.f32 %v749, 0.0
      %v770 = vmax.f32 %v752, 0.0
      %v771 = vld [vmem:[%s6] sm:$0x1]
      %v772 = vld [vmem:[%s7] sm:$0x1]
      %773 = vmatprep.subr.mxu0 0.0
      %774 = vmatpush1.xpose.msra.mxu0 %v755
      %775 = vmatprep.subr.mxu0 0.0
      %776 = vmatpush1.xpose.msra.mxu0 %v756
      %777 = vmatprep.subr.mxu0 0.0
      %778 = vmatpush1.xpose.msra.mxu0 %v757
      %779 = vmatprep.subr.mxu0 0.0
      %780 = vmatpush1.xpose.msra.mxu0 %v758
      %781 = vmatprep.subr.mxu0 0.0
      %782 = vmatpush1.xpose.msra.mxu0 %v759
      %783 = vmatprep.subr.mxu0 0.0
      %784 = vmatpush1.xpose.msra.mxu0 %v760
      %785 = vmatprep.subr.mxu0 0.0
      %786 = vmatpush1.xpose.msra.mxu0 %v761
      %787 = vmatprep.subr.mxu0 0.0
      %788 = vmatpush1.xpose.msra.mxu0 %v762
      %789 = vmatprep.subr.mxu0 0.0
      %790 = vmatpush1.xpose.msra.mxu0 %v763
      %791 = vmatprep.subr.mxu0 0.0
      %792 = vmatpush1.xpose.msra.mxu0 %v764
      %793 = vmatprep.subr.mxu0 0.0
      %794 = vmatpush1.xpose.msra.mxu0 %v765
      %795 = vmatprep.subr.mxu0 0.0
      %796 = vmatpush1.xpose.msra.mxu0 %v766
      %797 = vmatprep.subr.mxu0 0.0
      %798 = vmatpush1.xpose.msra.mxu0 %v767
      %799 = vmatprep.subr.mxu0 0.0
      %800 = vmatpush1.xpose.msra.mxu0 %v768
      %801 = vmatprep.subr.mxu0 0.0
      %802 = vmatpush1.xpose.msra.mxu0 %v769
      %803 = vmatprep.subr.mxu0 0.0
      %804 = vmatpush1.xpose.msra.mxu0 %v770
      %805 = vmatprep.subr.mxu0 0.0
      %806 = vmatpush1.xpose.msra.mxu0 0.0
      %807 = vmatprep.subr.mxu0 0.0
      %808 = vmatpush1.xpose.msra.mxu0 0.0
      %809 = vmatprep.subr.mxu0 0.0
      %810 = vmatpush1.xpose.msra.mxu0 0.0
      %811 = vmatprep.subr.mxu0 0.0
      %812 = vmatpush1.xpose.msra.mxu0 0.0
      %813 = vmatprep.subr.mxu0 0.0
      %814 = vmatpush1.xpose.msra.mxu0 0.0
      %815 = vmatprep.subr.mxu0 0.0
      %816 = vmatpush1.xpose.msra.mxu0 0.0
      %817 = vmatprep.subr.mxu0 0.0
      %818 = vmatpush1.xpose.msra.mxu0 0.0
      %819 = vmatprep.subr.mxu0 0.0
      %820 = vmatpush1.xpose.msra.mxu0 0.0
      %821 = vmatprep.subr.mxu0 0.0
      %822 = vmatpush1.xpose.msra.mxu0 0.0
      %823 = vmatprep.subr.mxu0 0.0
      %824 = vmatpush1.xpose.msra.mxu0 0.0
      %825 = vmatprep.subr.mxu0 0.0
      %826 = vmatpush1.xpose.msra.mxu0 0.0
      %827 = vmatprep.subr.mxu0 0.0
      %828 = vmatpush1.xpose.msra.mxu0 0.0
      %829 = vmatprep.subr.mxu0 0.0
      %830 = vmatpush1.xpose.msra.mxu0 0.0
      %831 = vmatprep.subr.mxu0 0.0
      %832 = vmatpush1.xpose.msra.mxu0 0.0
      %833 = vmatprep.subr.mxu0 0.0
      %834 = vmatpush1.xpose.msra.mxu0 0.0
      %835 = vmatprep.subr.mxu0 0.0
      %836 = vmatpush1.xpose.msra.mxu0 0.0
      %837 = vmatprep.mubr.f32.mxu0 0.0
      %838 = vmatmul.mubr.f32.gmra.mrb[0].mxu0 %v772
      %v839 = vpop.f32.mrb[0].mxu0
      %v840 = vadd.f32 0.0, %v839
      %v841 = vpop.f32.mrb[0].mxu0
      %842 = vdwg.mxu0
      %843 = vmatprep.subr.mxu0 0.0
      %844 = vmatpush1.xpose.msra.mxu0 %v547
      %845 = vmatprep.subr.mxu0 0.0
      %846 = vmatpush1.xpose.msra.mxu0 %v548
      %847 = vmatprep.subr.mxu0 0.0
      %848 = vmatpush1.xpose.msra.mxu0 %v549
      %849 = vmatprep.subr.mxu0 0.0
      %850 = vmatpush1.xpose.msra.mxu0 %v550
      %851 = vmatprep.subr.mxu0 0.0
      %852 = vmatpush1.xpose.msra.mxu0 %v551
      %853 = vmatprep.subr.mxu0 0.0
      %854 = vmatpush1.xpose.msra.mxu0 %v552
      %855 = vmatprep.subr.mxu0 0.0
      %856 = vmatpush1.xpose.msra.mxu0 %v553
      %857 = vmatprep.subr.mxu0 0.0
      %858 = vmatpush1.xpose.msra.mxu0 %v554
      %859 = vmatprep.subr.mxu0 0.0
      %860 = vmatpush1.xpose.msra.mxu0 %v555
      %861 = vmatprep.subr.mxu0 0.0
      %862 = vmatpush1.xpose.msra.mxu0 %v556
      %863 = vmatprep.subr.mxu0 0.0
      %864 = vmatpush1.xpose.msra.mxu0 %v557
      %865 = vmatprep.subr.mxu0 0.0
      %866 = vmatpush1.xpose.msra.mxu0 %v558
      %867 = vmatprep.subr.mxu0 0.0
      %868 = vmatpush1.xpose.msra.mxu0 %v559
      %869 = vmatprep.subr.mxu0 0.0
      %870 = vmatpush1.xpose.msra.mxu0 %v560
      %871 = vmatprep.subr.mxu0 0.0
      %872 = vmatpush1.xpose.msra.mxu0 %v561
      %873 = vmatprep.subr.mxu0 0.0
      %874 = vmatpush1.xpose.msra.mxu0 %v562
      %875 = vmatprep.subr.mxu0 0.0
      %876 = vmatpush1.xpose.msra.mxu0 0.0
      %877 = vmatprep.subr.mxu0 0.0
      %878 = vmatpush1.xpose.msra.mxu0 0.0
      %879 = vmatprep.subr.mxu0 0.0
      %880 = vmatpush1.xpose.msra.mxu0 0.0
      %881 = vmatprep.subr.mxu0 0.0
      %882 = vmatpush1.xpose.msra.mxu0 0.0
      %883 = vmatprep.subr.mxu0 0.0
      %884 = vmatpush1.xpose.msra.mxu0 0.0
      %885 = vmatprep.subr.mxu0 0.0
      %886 = vmatpush1.xpose.msra.mxu0 0.0
      %887 = vmatprep.subr.mxu0 0.0
      %888 = vmatpush1.xpose.msra.mxu0 0.0
      %889 = vmatprep.subr.mxu0 0.0
      %890 = vmatpush1.xpose.msra.mxu0 0.0
      %891 = vmatprep.subr.mxu0 0.0
      %892 = vmatpush1.xpose.msra.mxu0 0.0
      %893 = vmatprep.subr.mxu0 0.0
      %894 = vmatpush1.xpose.msra.mxu0 0.0
      %895 = vmatprep.subr.mxu0 0.0
      %896 = vmatpush1.xpose.msra.mxu0 0.0
      %897 = vmatprep.subr.mxu0 0.0
      %898 = vmatpush1.xpose.msra.mxu0 0.0
      %899 = vmatprep.subr.mxu0 0.0
      %900 = vmatpush1.xpose.msra.mxu0 0.0
      %901 = vmatprep.subr.mxu0 0.0
      %902 = vmatpush1.xpose.msra.mxu0 0.0
      %903 = vmatprep.subr.mxu0 0.0
      %904 = vmatpush1.xpose.msra.mxu0 0.0
      %905 = vmatprep.subr.mxu0 0.0
      %906 = vmatpush1.xpose.msra.mxu0 0.0
      %907 = vmatprep.mubr.f32.mxu0 0.0
      %908 = vmatmul.mubr.f32.gmra.mrb[0].mxu0 %v771
      %v909 = vpop.f32.mrb[0].mxu0
      %v910 = vadd.f32 %v840, %v909
      %v911 = vpop.f32.mrb[0].mxu0
      %912 = vdwg.mxu0
      %s913 = sld [smem:[#allocation2]]
      %v914 = vstv %s913
      %v915 = vadd.f32 %v910, %v914
      %v916 = vxor.u32 %v915, 2147483648
      %v917 = vmul.f32 %v916, 1.442695
      %v918 = vpow.pop %v917
      %v919 = vadd.f32 %v918, 1.0
      %v920 = vrcp.pop %v919
      %v921 = vmul.f32 1.0, %v920
      %922 = vst [vmem:[%s353] sm:$0x1] %v921
      %p923 = scmp.lt.s32.totalorder %s21, 1
      %s924 = scalar_select %p923, %s21, 1
      %s925 = scalar_lea.vmem %s9, %s924
      // Predicated region
      $region57: #{model_forward.1} parent=55 // pred_check
        %p926 = pneg %p238
      $region58: #{model_forward.1} parent=55 // pred_check_branch
        %928 = sbr.rel (%p926) target = $region60
      $region59: #{model_forward.1} parent=55 // pred_region
        _
      $region60: #{model_forward.1} parent=55 // pred_fallthru
        _
    $region56: #{model_forward.1} parent=5 // pred_fallthru
      _
    %p929 = scmp.le.s32.totalorder 2, %s16
    // Predicated region
    $region61: #{model_forward.1} parent=5 // pred_check
      %p930 = pneg %p929
    $region62: #{model_forward.1} parent=5 // pred_check_branch
      %932 = sbr.rel (%p930) target = $region64
    $region63: #{model_forward.1} parent=5 // pred_region
      %s933 = ssub.s32 %s16, 2
      // Predicated region
      $region65: #{model_forward.1} parent=63 // pred_check
        %p934 = pneg %p244
      $region66: #{model_forward.1} parent=63 // pred_check_branch
        %936 = sbr.rel (%p934) target = $region68
      $region67: #{model_forward.1} parent=63 // pred_region
        %p937 = scmp.lt.s32.totalorder %s22, 1
        %s938 = scalar_select %p937, %s22, 1
        %s939 = scalar_lea.vmem %s9, %s938
      $region68: #{model_forward.1} parent=63 // pred_fallthru
        _
    $region64: #{model_forward.1} parent=5 // pred_fallthru
      _
  $region6: #{model_forward.1} parent=0 // loop_footer
    %s20 = sadd.s32 1, %s16
  $region7: #{model_forward.1} parent=0 // loop_footer_branch
    %15 = sbr.rel target = $region3
  $region8: #{model_forward.1} parent=0 // loop_exit
    _

</llo_original>
